<compile_context>
chip_gen: v6e
topology: v6e:2x2x1
jax: 0.10.0
libtpu: 0.0.40
codegen_flags: <defaults>
</compile_context>

<pallas_src>
import functools

import jax
import jax.numpy as jnp
from jax.experimental import pallas as pl
from jax.experimental.pallas import tpu as pltpu

HIDDEN = 32          # hidden width from the PyTorch spec
LANE = 128           # TPU lane width


def _round_up(x, m):
    return ((x + m - 1) // m) * m


def pack_params(w1, b1, w2, b2, w3, b3, action_max):
    """Pack all Actor parameters into one lane-aligned (rows, 128) f32 slab.

    Row layout (every section starts on an 8-row boundary):
        W1^T  rows [r_w1, r_w1+32),          cols [0, state_dim)
        b1    rows [r_b1, r_b1+32),          col  0   (column vector)
        W2^T  rows [r_w2, r_w2+32),          cols [0, 32)
        b2    rows [r_b2, r_b2+32),          col  0
        W3^T  rows [r_w3, r_w3+action_dim),  cols [0, 32)
        b3    rows [r_b3, r_b3+action_dim),  col  0
        amax  rows [r_am, r_am+action_dim),  col  0
    """
    state_dim = w1.shape[0]
    action_dim = w3.shape[1]
    assert w1.shape == (state_dim, HIDDEN)
    assert w2.shape == (HIDDEN, HIDDEN)
    assert w3.shape == (HIDDEN, action_dim)
    assert state_dim <= LANE

    r_w1 = 0
    r_b1 = _round_up(r_w1 + HIDDEN, 8)
    r_w2 = _round_up(r_b1 + HIDDEN, 8)
    r_b2 = _round_up(r_w2 + HIDDEN, 8)
    r_w3 = _round_up(r_b2 + HIDDEN, 8)
    r_b3 = _round_up(r_w3 + action_dim, 8)
    r_am = _round_up(r_b3 + action_dim, 8)
    n_rows = _round_up(r_am + action_dim, 8)

    slab = jnp.zeros((n_rows, LANE), jnp.float32)
    slab = slab.at[r_w1:r_w1 + HIDDEN, :state_dim].set(w1.T)
    slab = slab.at[r_b1:r_b1 + HIDDEN, 0].set(b1.reshape(-1))
    slab = slab.at[r_w2:r_w2 + HIDDEN, :HIDDEN].set(w2.T)
    slab = slab.at[r_b2:r_b2 + HIDDEN, 0].set(b2.reshape(-1))
    slab = slab.at[r_w3:r_w3 + action_dim, :HIDDEN].set(w3.T)
    slab = slab.at[r_b3:r_b3 + action_dim, 0].set(b3.reshape(-1))
    slab = slab.at[r_am:r_am + action_dim, 0].set(
        jnp.asarray(action_max, jnp.float32).reshape(-1))

    offs = dict(w1=r_w1, b1=r_b1, w2=r_w2, b2=r_b2, w3=r_w3, b3=r_b3, am=r_am)
    return slab, offs


def _actor_kernel(state_ref, p_ref, out_ref, *, state_dim, action_dim, offs):
    # state_ref: (state_dim, tb)  p_ref: (n_rows, 128)  out_ref: (action_dim, tb)

    # ---- layer 1: Linear(state_dim, 32) + ReLU  (VPU broadcast FMAs) ---------
    # K = state_dim (e.g. 2) is far too degenerate for the MXU.
    h1 = p_ref[offs["b1"]:offs["b1"] + HIDDEN, 0:1]               # (32, 1)
    for k in range(state_dim):                                    # static unroll
        xk = state_ref[k:k + 1, :]                                # (1, tb)
        w1k = p_ref[offs["w1"]:offs["w1"] + HIDDEN, k:k + 1]      # (32, 1)
        h1 = h1 + w1k * xk                                        # (32, tb)
    h1 = jnp.maximum(h1, 0.0)

    # ---- layer 2: Linear(32, 32) + ReLU  (MXU, N = tb) -----------------------
    h2 = jnp.dot(p_ref[offs["w2"]:offs["w2"] + HIDDEN, :HIDDEN], h1,
                 preferred_element_type=jnp.float32)              # (32, tb)
    h2 = jnp.maximum(h2 + p_ref[offs["b2"]:offs["b2"] + HIDDEN, 0:1], 0.0)

    # ---- layer 3: Linear(32, action_dim), epilogue only on real action rows --
    temp = jnp.dot(p_ref[offs["w3"]:offs["w3"] + action_dim, :HIDDEN], h2,
                   preferred_element_type=jnp.float32)            # (action_dim, tb)
    temp = temp + p_ref[offs["b3"]:offs["b3"] + action_dim, 0:1]
    amax = p_ref[offs["am"]:offs["am"] + action_dim, 0:1]
    out_ref[...] = (amax * jnp.tanh(temp)).astype(out_ref.dtype)


def actor_forward(state, params, *, block_b=2048):
    """state: (B, state_dim) float32; returns (B, action_dim) float32."""
    w1, b1, w2, b2, w3, b3, amax = (params["w1"], params["b1"], params["w2"],
                                    params["b2"], params["w3"], params["b3"],
                                    params["action_max"])
    B, state_dim = state.shape
    action_dim = w3.shape[1]

    slab, offs = pack_params(w1, b1, w2, b2, w3, b3, amax)
    n_rows = slab.shape[0]

    # Batch tile (lane dim): multiple of 128, at most block_b, and clamped to
    # ~half the padded batch so the grid has >= 2 steps whenever B > 128
    # (gives both v7x TensorCores work via dimension_semantics=("parallel",)).
    block_b = max(LANE, _round_up(block_b, LANE))
    b128 = _round_up(B, LANE)
    half = _round_up(pl.cdiv(b128, 2), LANE)
    tb = max(LANE, min(block_b, half))
    b_pad = _round_up(B, tb)

    # Batch-in-lanes orientation: (state_dim, b_pad) in, (action_dim, b_pad) out.
    state_t = jnp.transpose(state.astype(jnp.float32))            # (state_dim, B)
    if b_pad != B:
        state_t = jnp.pad(state_t, ((0, 0), (0, b_pad - B)))

    kernel = functools.partial(_actor_kernel, state_dim=state_dim,
                               action_dim=action_dim, offs=offs)

    out = pl.pallas_call(
        kernel,
        out_shape=jax.ShapeDtypeStruct((action_dim, b_pad), jnp.float32),
        grid=(b_pad // tb,),
        in_specs=[
            # batch tiles stream through the auto double-buffered pipeline
            pl.BlockSpec((state_dim, tb), lambda i: (0, i)),
            # single packed parameter slab, resident across all grid steps
            pl.BlockSpec((n_rows, LANE), lambda i: (0, 0)),
        ],
        out_specs=pl.BlockSpec((action_dim, tb), lambda i: (0, i)),
        compiler_params=pltpu.CompilerParams(
            dimension_semantics=("parallel",)),    # v7x: shard batch over 2 TCs
    )(state_t, slab)

    # (action_dim, b_pad) -> (B, action_dim); both slices touch only real data.
    return out[:, :B].T


def init_params(key, state_dim, hidden, action_dim, action_max):
    """Deterministic synthetic init (PyTorch-Linear-like uniform ranges)."""
    assert hidden == HIDDEN
    ks = jax.random.split(key, 6)

    def lin(kw, kb, fan_in, fan_out):
        bound = 1.0 / jnp.sqrt(jnp.float32(fan_in))
        # stored as (in, out): transpose of torch's (out, in) weight
        w = jax.random.uniform(kw, (fan_in, fan_out), jnp.float32, -bound, bound)
        b = jax.random.uniform(kb, (1, fan_out), jnp.float32, -bound, bound)
        return w, b

    w1, b1 = lin(ks[0], ks[1], state_dim, hidden)
    w2, b2 = lin(ks[2], ks[3], hidden, hidden)
    w3, b3 = lin(ks[4], ks[5], hidden, action_dim)
    amax = jnp.asarray(action_max, jnp.float32).reshape(1, action_dim)
    return {"w1": w1, "b1": b1, "w2": w2, "b2": b2,
            "w3": w3, "b3": b3, "action_max": amax}


def actor_reference(state, p):
    h1 = jnp.maximum(state @ p["w1"] + p["b1"], 0.0)
    h2 = jnp.maximum(h1 @ p["w2"] + p["b2"], 0.0)
    return p["action_max"] * jnp.tanh(h2 @ p["w3"] + p["b3"])


if __name__ == "__main__":
    # MountainCarContinuous-like sizes: state_dim=2, action_dim=1, hidden=32
    batch, state_dim, hidden, action_dim = 8, 2, 32, 1
    action_max = [1.0]

    key = jax.random.PRNGKey(0)
    k_state, k_params, k_big = jax.random.split(key, 3)
    params = init_params(k_params, state_dim, hidden, action_dim, action_max)

    # small demo batch (single 128-lane tile)
    state = jax.random.normal(k_state, (batch, state_dim), jnp.float32)
    out = jax.block_until_ready(actor_forward(state, params))
    ref = actor_reference(state, params)
    assert out.shape == (batch, action_dim)
    assert jnp.allclose(out, ref, atol=1e-5, rtol=1e-5)

    # larger batch exercising batch padding + the gridded (>=2 step) pipeline
    big_state = jax.random.normal(k_big, (1000, state_dim), jnp.float32)
    out_big = jax.block_until_ready(actor_forward(big_state, params))
    ref_big = actor_reference(big_state, params)
    assert out_big.shape == (1000, action_dim)
    assert jnp.allclose(out_big, ref_big, atol=1e-5, rtol=1e-5)

    print("KERNEL_OK")
</pallas_src>

<mosaic_0001>
module attributes {stable_mosaic.version = 11 : i64} {
  func.func @_actor_kernel(%arg0: i32, %arg1: memref<2x128xf32, #tpu.memory_space<vmem>>, %arg2: memref<152x128xf32, #tpu.memory_space<vmem>>, %arg3: memref<1x128xf32, #tpu.memory_space<vmem>>) attributes {dimension_semantics = [#tpu.dimension_semantics<parallel>], iteration_bounds = array<i64: 1>, scalar_prefetch = 0 : i64, scratch_operands = 0 : i64, tpu.core_type = #tpu.core_type<tc>, window_params = [{transform_indices = @transform_0, window_bounds = array<i64: 2, 128>}, {pipeline_mode = #tpu.pipeline_mode<synchronous>, transform_indices = @transform_1, window_bounds = array<i64: 152, 128>}, {transform_indices = @transform_2, window_bounds = array<i64: 1, 128>}]} {
    %c32 = arith.constant 32 : index
    %c0 = arith.constant 0 : index
    %0 = vector.load %arg2[%c32, %c0] : memref<152x128xf32, #tpu.memory_space<vmem>>, vector<32x1xf32>
    %c0_0 = arith.constant 0 : index
    %c0_1 = arith.constant 0 : index
    %1 = vector.load %arg1[%c0_0, %c0_1] : memref<2x128xf32, #tpu.memory_space<vmem>>, vector<1x128xf32>
    %c0_2 = arith.constant 0 : index
    %c0_3 = arith.constant 0 : index
    %2 = vector.load %arg2[%c0_2, %c0_3] : memref<152x128xf32, #tpu.memory_space<vmem>>, vector<32x1xf32>
    %3 = vector.broadcast %2 : vector<32x1xf32> to vector<32x128xf32>
    %4 = vector.broadcast %1 : vector<1x128xf32> to vector<32x128xf32>
    %5 = arith.mulf %3, %4 : vector<32x128xf32>
    %6 = vector.broadcast %0 : vector<32x1xf32> to vector<32x128xf32>
    %7 = arith.addf %6, %5 : vector<32x128xf32>
    %c1 = arith.constant 1 : index
    %c0_4 = arith.constant 0 : index
    %8 = vector.load %arg1[%c1, %c0_4] : memref<2x128xf32, #tpu.memory_space<vmem>>, vector<1x128xf32>
    %c0_5 = arith.constant 0 : index
    %c1_6 = arith.constant 1 : index
    %9 = vector.load %arg2[%c0_5, %c1_6] : memref<152x128xf32, #tpu.memory_space<vmem>>, vector<32x1xf32>
    %10 = vector.broadcast %9 : vector<32x1xf32> to vector<32x128xf32>
    %11 = vector.broadcast %8 : vector<1x128xf32> to vector<32x128xf32>
    %12 = arith.mulf %10, %11 : vector<32x128xf32>
    %13 = arith.addf %7, %12 : vector<32x128xf32>
    %cst = arith.constant 0.000000e+00 : f32
    %14 = vector.broadcast %cst : f32 to vector<32x128xf32>
    %15 = arith.maximumf %13, %14 : vector<32x128xf32>
    %c64 = arith.constant 64 : index
    %c0_7 = arith.constant 0 : index
    %16 = vector.load %arg2[%c64, %c0_7] : memref<152x128xf32, #tpu.memory_space<vmem>>, vector<32x32xf32>
    %cst_8 = arith.constant dense<0.000000e+00> : vector<32x128xf32>
    %17 = tpu.matmul %16, %15, %cst_8 {dimension_numbers = #tpu.dot_dimension_numbers<[1], [0], [0], [1], [0, 0, 1, 1], [], []>} : vector<32x32xf32>, vector<32x128xf32>, vector<32x128xf32> -> vector<32x128xf32>
    %c96 = arith.constant 96 : index
    %c0_9 = arith.constant 0 : index
    %18 = vector.load %arg2[%c96, %c0_9] : memref<152x128xf32, #tpu.memory_space<vmem>>, vector<32x1xf32>
    %19 = vector.broadcast %18 : vector<32x1xf32> to vector<32x128xf32>
    %20 = arith.addf %17, %19 : vector<32x128xf32>
    %cst_10 = arith.constant 0.000000e+00 : f32
    %21 = vector.broadcast %cst_10 : f32 to vector<32x128xf32>
    %22 = arith.maximumf %20, %21 : vector<32x128xf32>
    %c128 = arith.constant 128 : index
    %c0_11 = arith.constant 0 : index
    %23 = vector.load %arg2[%c128, %c0_11] : memref<152x128xf32, #tpu.memory_space<vmem>>, vector<1x32xf32>
    %cst_12 = arith.constant dense<0.000000e+00> : vector<1x128xf32>
    %24 = tpu.matmul %23, %22, %cst_12 {dimension_numbers = #tpu.dot_dimension_numbers<[1], [0], [0], [1], [0, 0, 1, 1], [], []>} : vector<1x32xf32>, vector<32x128xf32>, vector<1x128xf32> -> vector<1x128xf32>
    %c136 = arith.constant 136 : index
    %c0_13 = arith.constant 0 : index
    %25 = vector.load %arg2[%c136, %c0_13] : memref<152x128xf32, #tpu.memory_space<vmem>>, vector<1x1xf32>
    %26 = vector.broadcast %25 : vector<1x1xf32> to vector<1x128xf32>
    %27 = arith.addf %24, %26 : vector<1x128xf32>
    %c144 = arith.constant 144 : index
    %c0_14 = arith.constant 0 : index
    %28 = vector.load %arg2[%c144, %c0_14] : memref<152x128xf32, #tpu.memory_space<vmem>>, vector<1x1xf32>
    %29 = math.tanh %27 : vector<1x128xf32>
    %30 = vector.broadcast %28 : vector<1x1xf32> to vector<1x128xf32>
    %31 = arith.mulf %30, %29 : vector<1x128xf32>
    %c0_15 = arith.constant 0 : index
    %c0_16 = arith.constant 0 : index
    %32 = vector.load %arg3[%c0_15, %c0_16] : memref<1x128xf32, #tpu.memory_space<vmem>>, vector<1x128xf32>
    tpu.vector_store %arg3[%c0_15, %c0_16], %31 {strides = array<i32>} : memref<1x128xf32, #tpu.memory_space<vmem>>, vector<1x128xf32>,
    return
  }
  func.func @transform_0(%arg0: i32) -> (i32, i32) {
    %c0_i32 = arith.constant 0 : i32
    %c0_i32_0 = arith.constant 0 : i32
    return %c0_i32, %arg0 : i32, i32
  }
  func.func @transform_1(%arg0: i32) -> (i32, i32) {
    %c0_i32 = arith.constant 0 : i32
    %c0_i32_0 = arith.constant 0 : i32
    %c0_i32_1 = arith.constant 0 : i32
    return %c0_i32, %c0_i32_0 : i32, i32
  }
  func.func @transform_2(%arg0: i32) -> (i32, i32) {
    %c0_i32 = arith.constant 0 : i32
    %c0_i32_0 = arith.constant 0 : i32
    return %c0_i32, %arg0 : i32, i32
  }
}

</mosaic_0001>

<llo_original>
// kernel: tpu_custom_call.1
$region0: #{tpu_custom_call.1}
  #allocation0 [shape = 'u32[]', space=smem, size = 0x4, offset = 0x4, fixed_abs, tag = 'smem constant byte address 0x4 - core index']
  #allocation1 [shape = 'u32[144,128]{1,0:T(1,128)}', space=vmem, size = 0x12000, scoped, tag = 'internal scratch']
  %s0 = inlined_call_operand.hbm [shape: f32[2,128], index: 0, kind: input, shape index: {}]
  %s1 = inlined_call_operand.hbm [shape: f32[152,128], index: 1, kind: input, shape index: {}]
  %s2 = inlined_call_operand.hbm [shape: f32[1,128], index: 2, kind: output, shape index: {}]
  %s3 = sld [smem:[#allocation0]]
  $region26: #{tpu_custom_call.1} parent=0
    _
  %s5 = ssub.s32 1, %s3
  %s6 = scalar_select 0, %s5, %s3
  $region1: #{tpu_custom_call.1} parent=0
    #allocation2 [shape = 'u8[1024]{0}', space=vmem, size = 0x400, scoped, tag = 'input window, operand 0, single buffered']
    #allocation3 [shape = 's32[1]{0}', space=sflag, size = 0x4, scoped, tag = 'scoped memory for tpu_custom_call.1']
    #allocation4 [shape = 's32[1]{0}', space=sflag, size = 0x4, scoped, tag = 'scoped memory for tpu_custom_call.1']
    #allocation5 [shape = 'u8[77824]{0}', space=vmem, size = 0x13000, scoped, tag = 'input window, operand 1, single buffered']
    #allocation6 [shape = 's32[1]{0}', space=sflag, size = 0x4, scoped, tag = 'scoped memory for tpu_custom_call.1']
    #allocation7 [shape = 'u8[512]{0}', space=vmem, size = 0x400, scoped, tag = 'output window, operand 0, single buffered']
    %7 = vsyncpa [#allocation3], 0
    %8 = vsyncpa [#allocation6], 0
    %9 = vsyncpa [#allocation4], 0
    // Predicated region
    $region2: #{tpu_custom_call.1} parent=1 // pred_check
      _
    $region3: #{tpu_custom_call.1} parent=1 // pred_check_branch
      %11 = sbr.rel (0) target = $region5
    $region4: #{tpu_custom_call.1} parent=1 // pred_region
      %s13 = ssub.s32 32, 32
      %14 = vsyncadd [#allocation3], %s13
      %s16 = sshll.u32 [#allocation2], 4
      %s17 = int_to_ptr.vmem [resolvable:$true] %s16
      %19 = dma.hbm_to_vmem [thread:$0]  %s0, 32, %s17, [#allocation3]
    $region5: #{tpu_custom_call.1} parent=1 // pred_fallthru
      _
    // Predicated region
    $region6: #{tpu_custom_call.1} parent=1 // pred_check
      _
    $region7: #{tpu_custom_call.1} parent=1 // pred_check_branch
      %21 = sbr.rel (0) target = $region9
    $region8: #{tpu_custom_call.1} parent=1 // pred_region
      %s23 = ssub.s32 2432, 2432
      %24 = vsyncadd [#allocation6], %s23
      %s25 = sshll.u32 [#allocation5], 4
      %s26 = int_to_ptr.vmem [resolvable:$true] %s25
      %31 = dma.hbm_to_vmem [thread:$0]  %s1, 2432, %s26, [#allocation6], 128, 128, 8
    $region9: #{tpu_custom_call.1} parent=1 // pred_fallthru
      _
    // Predicated region
    $region10: #{tpu_custom_call.1} parent=1 // pred_check
      _
    $region11: #{tpu_custom_call.1} parent=1 // pred_check_branch
      %33 = sbr.rel (0) target = $region13
    $region12: #{tpu_custom_call.1} parent=1 // pred_region
      %34 = dma.done [#allocation3], 32
    $region13: #{tpu_custom_call.1} parent=1 // pred_fallthru
      _
    // Predicated region
    $region14: #{tpu_custom_call.1} parent=1 // pred_check
      _
    $region15: #{tpu_custom_call.1} parent=1 // pred_check_branch
      %36 = sbr.rel (0) target = $region17
    $region16: #{tpu_custom_call.1} parent=1 // pred_region
      %37 = dma.done [#allocation6], 2432
    $region17: #{tpu_custom_call.1} parent=1 // pred_fallthru
      _
    %v38 = vld [vmem:[#allocation5 + $0x20] sm:$0xff]
    %v39 = vld [vmem:[#allocation5 + $0x28] sm:$0xff]
    %v40 = vld [vmem:[#allocation5 + $0x30] sm:$0xff]
    %v41 = vld [vmem:[#allocation5 + $0x38] sm:$0xff]
    %v42 = vld [vmem:[#allocation2] sm:$0x1]
    %v43 = vld [vmem:[#allocation5] sm:$0xff]
    %v44 = vld [vmem:[#allocation5 + $0x8] sm:$0xff]
    %v45 = vld [vmem:[#allocation5 + $0x10] sm:$0xff]
    %v46 = vld [vmem:[#allocation5 + $0x18] sm:$0xff]
    %48 = vset.pattern.permute.xlu0 0
    %49 = vperm.xlu0 %48, %v43
    %v50 = vpop.permute.xlu0 %49
    %53 = vset.pattern.permute.xlu0 0
    %54 = vperm.xlu0 %53, %v44
    %v55 = vpop.permute.xlu0 %54
    %58 = vset.pattern.permute.xlu0 0
    %59 = vperm.xlu0 %58, %v45
    %v60 = vpop.permute.xlu0 %59
    %63 = vset.pattern.permute.xlu0 0
    %64 = vperm.xlu0 %63, %v46
    %v65 = vpop.permute.xlu0 %64
    %v67 = vlaneseq
    %v68 = vshrl.u32 %v67, 7
    %v69 = vsub.s32 0, %v68
    %v70 = vrot.slane %v42, %v69
    %v71 = vmul.f32 %v50, %v70
    %v72 = vmul.f32 %v55, %v70
    %v73 = vmul.f32 %v60, %v70
    %v74 = vmul.f32 %v65, %v70
    %76 = vset.pattern.permute.xlu0 0
    %77 = vperm.xlu0 %76, %v38
    %v78 = vpop.permute.xlu0 %77
    %81 = vset.pattern.permute.xlu0 0
    %82 = vperm.xlu0 %81, %v39
    %v83 = vpop.permute.xlu0 %82
    %86 = vset.pattern.permute.xlu0 0
    %87 = vperm.xlu0 %86, %v40
    %v88 = vpop.permute.xlu0 %87
    %91 = vset.pattern.permute.xlu0 0
    %92 = vperm.xlu0 %91, %v41
    %v93 = vpop.permute.xlu0 %92
    %v95 = vadd.f32 %v78, %v71
    %v96 = vadd.f32 %v83, %v72
    %v97 = vadd.f32 %v88, %v73
    %v98 = vadd.f32 %v93, %v74
    %v99 = vld [vmem:[#allocation2 + $0x1] sm:$0x1]
    %100 = vset.pattern.permute.xlu0 1
    %101 = vperm.xlu0 %100, %v43
    %v102 = vpop.permute.xlu0 %101
    %104 = vset.pattern.permute.xlu0 1
    %105 = vperm.xlu0 %104, %v44
    %v106 = vpop.permute.xlu0 %105
    %108 = vset.pattern.permute.xlu0 1
    %109 = vperm.xlu0 %108, %v45
    %v110 = vpop.permute.xlu0 %109
    %112 = vset.pattern.permute.xlu0 1
    %113 = vperm.xlu0 %112, %v46
    %v114 = vpop.permute.xlu0 %113
    %v116 = vlaneseq
    %v117 = vshrl.u32 %v116, 7
    %v118 = vsub.s32 0, %v117
    %v119 = vrot.slane %v99, %v118
    %v120 = vmul.f32 %v102, %v119
    %v121 = vmul.f32 %v106, %v119
    %v122 = vmul.f32 %v110, %v119
    %v123 = vmul.f32 %v114, %v119
    %v124 = vadd.f32 %v95, %v120
    %v125 = vadd.f32 %v96, %v121
    %v126 = vadd.f32 %v97, %v122
    %v127 = vadd.f32 %v98, %v123
    %v128 = vmax.f32 %v124, 0.0
    %v129 = vmax.f32 %v125, 0.0
    %v130 = vmax.f32 %v126, 0.0
    %v131 = vmax.f32 %v127, 0.0
    %v132 = vld [vmem:[#allocation5 + $0x40] sm:$0xff]
    %v133 = vld [vmem:[#allocation5 + $0x48] sm:$0xff]
    %v134 = vld [vmem:[#allocation5 + $0x50] sm:$0xff]
    %v135 = vld [vmem:[#allocation5 + $0x58] sm:$0xff]
    %v136 = vld [vmem:[#allocation5 + $0x60] sm:$0xff]
    %v137 = vld [vmem:[#allocation5 + $0x68] sm:$0xff]
    %v138 = vld [vmem:[#allocation5 + $0x70] sm:$0xff]
    %v139 = vld [vmem:[#allocation5 + $0x78] sm:$0xff]
    %141 = vset.pattern.permute.xlu0 0
    %142 = vperm.xlu0 %141, %v136
    %v143 = vpop.permute.xlu0 %142
    %146 = vset.pattern.permute.xlu0 0
    %147 = vperm.xlu0 %146, %v137
    %v148 = vpop.permute.xlu0 %147
    %151 = vset.pattern.permute.xlu0 0
    %152 = vperm.xlu0 %151, %v138
    %v153 = vpop.permute.xlu0 %152
    %156 = vset.pattern.permute.xlu0 0
    %157 = vperm.xlu0 %156, %v139
    %v158 = vpop.permute.xlu0 %157
    %vm160 = vcmask 261120
    %v162 = vsel %vm160, %v132, 0
    %v165 = vsel %vm160, %v133, 0
    %v168 = vsel %vm160, %v134, 0
    %v171 = vsel %vm160, %v135, 0
    %173 = vmatprep.subr.mxu0 0.0
    %174 = vmatpush1.msra.mxu0 0.0
    %175 = vmatprep.subr.mxu0 0.0
    %176 = vmatpush1.msra.mxu0 0.0
    %177 = vmatprep.subr.mxu0 0.0
    %178 = vmatpush1.msra.mxu0 0.0
    %179 = vmatprep.subr.mxu0 0.0
    %180 = vmatpush1.msra.mxu0 0.0
    %181 = vmatprep.subr.mxu0 0.0
    %182 = vmatpush1.msra.mxu0 0.0
    %183 = vmatprep.subr.mxu0 0.0
    %184 = vmatpush1.msra.mxu0 0.0
    %185 = vmatprep.subr.mxu0 0.0
    %186 = vmatpush1.msra.mxu0 0.0
    %187 = vmatprep.subr.mxu0 0.0
    %188 = vmatpush1.msra.mxu0 0.0
    %189 = vmatprep.subr.mxu0 0.0
    %190 = vmatpush1.msra.mxu0 0.0
    %191 = vmatprep.subr.mxu0 0.0
    %192 = vmatpush1.msra.mxu0 0.0
    %193 = vmatprep.subr.mxu0 0.0
    %194 = vmatpush1.msra.mxu0 0.0
    %195 = vmatprep.subr.mxu0 0.0
    %196 = vmatpush1.msra.mxu0 0.0
    %197 = vmatprep.subr.mxu0 0.0
    %198 = vmatpush1.msra.mxu0 %v131
    %199 = vmatprep.subr.mxu0 0.0
    %200 = vmatpush1.msra.mxu0 %v130
    %201 = vmatprep.subr.mxu0 0.0
    %202 = vmatpush1.msra.mxu0 %v129
    %203 = vmatprep.subr.mxu0 0.0
    %204 = vmatpush1.msra.mxu0 %v128
    %205 = vmatprep.subr.mxu0 0.0
    %206 = vmatpush2.msra.mxu0 0.0
    %207 = vmatprep.subr.mxu0 0.0
    %208 = vmatpush2.msra.mxu0 0.0
    %209 = vmatprep.subr.mxu0 0.0
    %210 = vmatpush2.msra.mxu0 0.0
    %211 = vmatprep.subr.mxu0 0.0
    %212 = vmatpush2.msra.mxu0 0.0
    %213 = vmatprep.subr.mxu0 0.0
    %214 = vmatpush2.msra.mxu0 0.0
    %215 = vmatprep.subr.mxu0 0.0
    %216 = vmatpush2.msra.mxu0 0.0
    %217 = vmatprep.subr.mxu0 0.0
    %218 = vmatpush2.msra.mxu0 0.0
    %219 = vmatprep.subr.mxu0 0.0
    %220 = vmatpush2.msra.mxu0 0.0
    %221 = vmatprep.subr.mxu0 0.0
    %222 = vmatpush2.msra.mxu0 0.0
    %223 = vmatprep.subr.mxu0 0.0
    %224 = vmatpush2.msra.mxu0 0.0
    %225 = vmatprep.subr.mxu0 0.0
    %226 = vmatpush2.msra.mxu0 0.0
    %227 = vmatprep.subr.mxu0 0.0
    %228 = vmatpush2.msra.mxu0 0.0
    %229 = vmatprep.subr.mxu0 0.0
    %230 = vmatpush2.msra.mxu0 0.0
    %231 = vmatprep.subr.mxu0 0.0
    %232 = vmatpush2.msra.mxu0 0.0
    %233 = vmatprep.subr.mxu0 0.0
    %234 = vmatpush2.msra.mxu0 0.0
    %235 = vmatprep.subr.mxu0 0.0
    %236 = vmatpush2.msra.mxu0 0.0
    %237 = vmatprep.mubr.f32.mxu0 0.0
    %238 = vmatmul.mubr.f32.gmra.mxu0 %v162
    %v239 = vpop.f32.mrf.mxu0
    %v240 = vadd.f32 %v143, %v239
    %v241 = vpop.f32.mrf.mxu0
    %242 = vmatprep.mubr.f32.mxu0 0.0
    %243 = vmatmul.mubr.f32.gmra.mxu0 %v165
    %v244 = vpop.f32.mrf.mxu0
    %v245 = vadd.f32 %v148, %v244
    %v246 = vpop.f32.mrf.mxu0
    %247 = vmatprep.mubr.f32.mxu0 0.0
    %248 = vmatmul.mubr.f32.gmra.mxu0 %v168
    %v249 = vpop.f32.mrf.mxu0
    %v250 = vadd.f32 %v153, %v249
    %v251 = vpop.f32.mrf.mxu0
    %252 = vmatprep.mubr.f32.mxu0 0.0
    %253 = vmatmul.mubr.f32.gmra.mxu0 %v171
    %v254 = vpop.f32.mrf.mxu0
    %v255 = vadd.f32 %v158, %v254
    %v256 = vpop.f32.mrf.mxu0
    %257 = vdwg.mxu0
    %v258 = vmax.f32 %v240, 0.0
    %v259 = vmax.f32 %v245, 0.0
    %v260 = vmax.f32 %v250, 0.0
    %v261 = vmax.f32 %v255, 0.0
    %v262 = vld [vmem:[#allocation5 + $0x80] sm:$0x1]
    %v263 = vld [vmem:[#allocation5 + $0x88] sm:$0x1]
    %265 = vset.pattern.permute.xlu0 0
    %266 = vperm.xlu0 %265, %v263
    %v267 = vpop.permute.xlu0 %266
    %v270 = vsel %vm160, %v262, 0
    %272 = vmatprep.subr.mxu0 0.0
    %273 = vmatpush1.msra.mxu0 0.0
    %274 = vmatprep.subr.mxu0 0.0
    %275 = vmatpush1.msra.mxu0 0.0
    %276 = vmatprep.subr.mxu0 0.0
    %277 = vmatpush1.msra.mxu0 0.0
    %278 = vmatprep.subr.mxu0 0.0
    %279 = vmatpush1.msra.mxu0 0.0
    %280 = vmatprep.subr.mxu0 0.0
    %281 = vmatpush1.msra.mxu0 0.0
    %282 = vmatprep.subr.mxu0 0.0
    %283 = vmatpush1.msra.mxu0 0.0
    %284 = vmatprep.subr.mxu0 0.0
    %285 = vmatpush1.msra.mxu0 0.0
    %286 = vmatprep.subr.mxu0 0.0
    %287 = vmatpush1.msra.mxu0 0.0
    %288 = vmatprep.subr.mxu0 0.0
    %289 = vmatpush1.msra.mxu0 0.0
    %290 = vmatprep.subr.mxu0 0.0
    %291 = vmatpush1.msra.mxu0 0.0
    %292 = vmatprep.subr.mxu0 0.0
    %293 = vmatpush1.msra.mxu0 0.0
    %294 = vmatprep.subr.mxu0 0.0
    %295 = vmatpush1.msra.mxu0 0.0
    %296 = vmatprep.subr.mxu0 0.0
    %297 = vmatpush1.msra.mxu0 %v261
    %298 = vmatprep.subr.mxu0 0.0
    %299 = vmatpush1.msra.mxu0 %v260
    %300 = vmatprep.subr.mxu0 0.0
    %301 = vmatpush1.msra.mxu0 %v259
    %302 = vmatprep.subr.mxu0 0.0
    %303 = vmatpush1.msra.mxu0 %v258
    %304 = vmatprep.subr.mxu0 0.0
    %305 = vmatpush2.msra.mxu0 0.0
    %306 = vmatprep.subr.mxu0 0.0
    %307 = vmatpush2.msra.mxu0 0.0
    %308 = vmatprep.subr.mxu0 0.0
    %309 = vmatpush2.msra.mxu0 0.0
    %310 = vmatprep.subr.mxu0 0.0
    %311 = vmatpush2.msra.mxu0 0.0
    %312 = vmatprep.subr.mxu0 0.0
    %313 = vmatpush2.msra.mxu0 0.0
    %314 = vmatprep.subr.mxu0 0.0
    %315 = vmatpush2.msra.mxu0 0.0
    %316 = vmatprep.subr.mxu0 0.0
    %317 = vmatpush2.msra.mxu0 0.0
    %318 = vmatprep.subr.mxu0 0.0
    %319 = vmatpush2.msra.mxu0 0.0
    %320 = vmatprep.subr.mxu0 0.0
    %321 = vmatpush2.msra.mxu0 0.0
    %322 = vmatprep.subr.mxu0 0.0
    %323 = vmatpush2.msra.mxu0 0.0
    %324 = vmatprep.subr.mxu0 0.0
    %325 = vmatpush2.msra.mxu0 0.0
    %326 = vmatprep.subr.mxu0 0.0
    %327 = vmatpush2.msra.mxu0 0.0
    %328 = vmatprep.subr.mxu0 0.0
    %329 = vmatpush2.msra.mxu0 0.0
    %330 = vmatprep.subr.mxu0 0.0
    %331 = vmatpush2.msra.mxu0 0.0
    %332 = vmatprep.subr.mxu0 0.0
    %333 = vmatpush2.msra.mxu0 0.0
    %334 = vmatprep.subr.mxu0 0.0
    %335 = vmatpush2.msra.mxu0 0.0
    %336 = vmatprep.mubr.f32.mxu0 0.0
    %337 = vmatmul.mubr.f32.gmra.mxu0 %v270
    %v338 = vpop.f32.mrf.mxu0
    %v339 = vadd.f32 %v267, %v338
    %v340 = vpop.f32.mrf.mxu0
    %341 = vdwg.mxu0
    %v342 = vld [vmem:[#allocation5 + $0x90] sm:$0x1]
    %v343 = vtanh.pop %v339
    %345 = vset.pattern.permute.xlu0 0
    %346 = vperm.xlu0 %345, %v342
    %v347 = vpop.permute.xlu0 %346
    %v349 = vmul.f32 %v347, %v343
    %350 = vst [vmem:[#allocation7] sm:$0x1] %v349
    // Predicated region
    $region18: #{tpu_custom_call.1} parent=1 // pred_check
      _
    $region19: #{tpu_custom_call.1} parent=1 // pred_check_branch
      %352 = sbr.rel (0) target = $region21
    $region20: #{tpu_custom_call.1} parent=1 // pred_region
      %s354 = ssub.s32 16, 16
      %355 = vsyncadd [#allocation4], %s354
      %s357 = sshll.u32 [#allocation7], 4
      %s358 = int_to_ptr.vmem [resolvable:$true] %s357
      %360 = dma.vmem_to_hbm [thread:$0]  %s358, 16, %s2, [#allocation4]
    $region21: #{tpu_custom_call.1} parent=1 // pred_fallthru
      _
    // Predicated region
    $region22: #{tpu_custom_call.1} parent=1 // pred_check
      _
    $region23: #{tpu_custom_call.1} parent=1 // pred_check_branch
      %362 = sbr.rel (0) target = $region25
    $region24: #{tpu_custom_call.1} parent=1 // pred_region
      %363 = dma.done [#allocation4], 16
    $region25: #{tpu_custom_call.1} parent=1 // pred_fallthru
      _
    %364 = vsyncpa [#allocation3], 1
    %365 = vsyncpa [#allocation6], 1
    %366 = vsyncpa [#allocation4], 1

</llo_original>
